<compile_context>
chip_gen: v7x
topology: tpu7x:2x2x1
jax: 0.10.0
libtpu: 0.0.40
codegen_flags: <defaults>
</compile_context>

<pallas_src>
import functools
import math

import jax
import jax.numpy as jnp
from jax import lax
from jax.experimental import pallas as pl
from jax.experimental.pallas import tpu as pltpu


def _round_up(x, m):
    return (x + m - 1) // m * m


def _patch_embed_kernel(p_ref, w_ref, b_ref, g_ref, beta_ref, o_ref, *, e_true):
    # bf16 x bf16 -> f32 accumulation on the MXU.
    y = jnp.dot(p_ref[...], w_ref[...], preferred_element_type=jnp.float32)
    y = y + b_ref[...]                       # padded E lanes stay exactly 0
    # LayerNorm over the true E lanes.  Padded lanes of y are 0, so plain lane
    # sums are correct as long as we divide by the true embed dim; one pass
    # variance via E[y^2] - E[y]^2.
    inv_e = 1.0 / e_true
    mean = jnp.sum(y, axis=-1, keepdims=True) * inv_e
    mean_sq = jnp.sum(y * y, axis=-1, keepdims=True) * inv_e
    var = jnp.maximum(mean_sq - mean * mean, 0.0)
    y_hat = (y - mean) * lax.rsqrt(var + 1e-5)
    # gamma/beta are zero on padded lanes -> padded output lanes are exactly 0.
    o_ref[...] = (y_hat * g_ref[...] + beta_ref[...]).astype(o_ref.dtype)


def _extract_patches(x_nchw, kh, kw, stride, ph, pw):
    """Overlapping patches with trailing-axis K-order (kh, kw, C).

    Returns (B, L, K) such that reshape to (B*L, K) is contiguous (no big
    transpose of the kh*kw/stride^2-inflated im2col matrix)."""
    B, C, H, W = x_nchw.shape
    h_out = (H + 2 * ph - kh) // stride + 1
    w_out = (W + 2 * pw - kw) // stride + 1
    x = jnp.transpose(x_nchw, (0, 2, 3, 1))                        # NHWC (input-sized)
    xp = jnp.pad(x, ((0, 0), (ph, ph), (pw, pw), (0, 0)))
    cols = []
    for i in range(kh):
        for j in range(kw):
            cols.append(xp[:, i:i + stride * h_out:stride,
                            j:j + stride * w_out:stride, :])
    patches = jnp.stack(cols, axis=3)                              # (B, h, w, kh*kw, C)
    return patches.reshape(B, h_out * w_out, kh * kw * C), h_out, w_out


@functools.partial(jax.jit, static_argnames=("patch_size", "stride"))
def overlap_patch_embed(x, conv_w, conv_b, ln_w, ln_b, *, patch_size, stride):
    """x: (B, C, H, W). conv_w: (E, C, kh, kw). Returns (tokens (B, L, E), H_out, W_out)."""
    B, C, H, W = x.shape
    E = conv_w.shape[0]
    kh = kw = patch_size
    ph = pw = patch_size // 2

    patches, h_out, w_out = _extract_patches(x, kh, kw, stride, ph, pw)
    L = h_out * w_out
    M = B * L
    K = C * kh * kw

    # Lane-dense padding and M tiling.
    K_pad = _round_up(K, 128)
    E_pad = _round_up(E, 128)
    TM = min(512, _round_up(M, 8))
    M_pad = _round_up(M, TM)

    # Activations / weight in bf16 for the MXU; bias / gamma / beta stay f32.
    p2d = patches.reshape(M, K).astype(jnp.bfloat16)
    p2d = jnp.pad(p2d, ((0, M_pad - M), (0, K_pad - K)))

    # Weight flattened with matching (kh, kw, C) K-ordering -> (K, E).
    w2d = conv_w.transpose(2, 3, 1, 0).reshape(K, E).astype(jnp.bfloat16)
    w2d = jnp.pad(w2d, ((0, K_pad - K), (0, E_pad - E)))

    b2d = jnp.pad(conv_b.reshape(1, E).astype(jnp.float32), ((0, 0), (0, E_pad - E)))
    g2d = jnp.pad(ln_w.reshape(1, E).astype(jnp.float32), ((0, 0), (0, E_pad - E)))
    beta2d = jnp.pad(ln_b.reshape(1, E).astype(jnp.float32), ((0, 0), (0, E_pad - E)))

    kernel = functools.partial(_patch_embed_kernel, e_true=float(E))

    tokens = pl.pallas_call(
        kernel,
        out_shape=jax.ShapeDtypeStruct((M_pad, E_pad), jnp.float32),
        grid=(M_pad // TM,),
        in_specs=[
            pl.BlockSpec((TM, K_pad), lambda i: (i, 0)),      # streamed token tiles
            pl.BlockSpec((K_pad, E_pad), lambda i: (0, 0)),   # resident weight
            pl.BlockSpec((1, E_pad), lambda i: (0, 0)),       # bias
            pl.BlockSpec((1, E_pad), lambda i: (0, 0)),       # LN gamma
            pl.BlockSpec((1, E_pad), lambda i: (0, 0)),       # LN beta
        ],
        out_specs=pl.BlockSpec((TM, E_pad), lambda i: (i, 0)),
        compiler_params=pltpu.CompilerParams(
            dimension_semantics=("parallel",)),
    )(p2d, w2d, b2d, g2d, beta2d)

    return tokens[:M, :E].reshape(B, L, E), h_out, w_out


def _reference(x, conv_w, conv_b, ln_w, ln_b, patch_size, stride):
    ph = patch_size // 2
    y = lax.conv_general_dilated(
        x.astype(jnp.float32), conv_w.astype(jnp.float32),
        window_strides=(stride, stride),
        padding=((ph, ph), (ph, ph)),
        dimension_numbers=("NCHW", "OIHW", "NCHW"),
    ) + conv_b.reshape(1, -1, 1, 1)
    B, E, H, W = y.shape
    t = y.reshape(B, E, H * W).transpose(0, 2, 1)
    mean = t.mean(-1, keepdims=True)
    var = ((t - mean) ** 2).mean(-1, keepdims=True)
    t = (t - mean) / jnp.sqrt(var + 1e-5)
    return t * ln_w + ln_b, H, W


if __name__ == "__main__":
    # Small, module-consistent shapes.
    B, C, HW = 2, 4, 16
    patch_size, stride, embed_dim = 7, 4, 32

    key = jax.random.PRNGKey(0)
    kx, kw = jax.random.split(key)

    x = jax.random.normal(kx, (B, C, HW, HW), dtype=jnp.float32)

    # Deterministic init matching the module's _init_weights:
    # Conv2d: normal(0, sqrt(2/fan_out)), fan_out = kh*kw*embed_dim; bias = 0.
    fan_out = patch_size * patch_size * embed_dim
    conv_w = jax.random.normal(
        kw, (embed_dim, C, patch_size, patch_size), dtype=jnp.float32
    ) * math.sqrt(2.0 / fan_out)
    conv_b = jnp.zeros((embed_dim,), dtype=jnp.float32)
    # LayerNorm: weight = 1, bias = 0.
    ln_w = jnp.ones((embed_dim,), dtype=jnp.float32)
    ln_b = jnp.zeros((embed_dim,), dtype=jnp.float32)

    tokens, H_out, W_out = overlap_patch_embed(
        x, conv_w, conv_b, ln_w, ln_b, patch_size=patch_size, stride=stride)
    tokens = jax.block_until_ready(tokens)

    ref, H_ref, W_ref = _reference(x, conv_w, conv_b, ln_w, ln_b, patch_size, stride)
    assert (int(H_out), int(W_out)) == (H_ref, W_ref)
    assert tokens.shape == (B, H_ref * W_ref, embed_dim)
    # bf16 MXU inputs (f32 accumulation + f32 LayerNorm): looser tolerance than
    # the all-f32 path, per review guidance.
    assert jnp.max(jnp.abs(tokens - ref)) < 5e-2

    print("KERNEL_OK")
</pallas_src>

<mosaic_0001>
module attributes {stable_mosaic.version = 11 : i64} {
  func.func @_patch_embed_kernel(%arg0: i32, %arg1: memref<32x256xbf16, #tpu.memory_space<vmem>>, %arg2: memref<256x128xbf16, #tpu.memory_space<vmem>>, %arg3: memref<1x128xf32, #tpu.memory_space<vmem>>, %arg4: memref<1x128xf32, #tpu.memory_space<vmem>>, %arg5: memref<1x128xf32, #tpu.memory_space<vmem>>, %arg6: memref<32x128xf32, #tpu.memory_space<vmem>>) attributes {dimension_semantics = [#tpu.dimension_semantics<parallel>], iteration_bounds = array<i64: 1>, scalar_prefetch = 0 : i64, scratch_operands = 0 : i64, tpu.core_type = #tpu.core_type<tc>, window_params = [{transform_indices = @transform_0, window_bounds = array<i64: 32, 256>}, {pipeline_mode = #tpu.pipeline_mode<synchronous>, transform_indices = @transform_1, window_bounds = array<i64: 256, 128>}, {pipeline_mode = #tpu.pipeline_mode<synchronous>, transform_indices = @transform_2, window_bounds = array<i64: 1, 128>}, {pipeline_mode = #tpu.pipeline_mode<synchronous>, transform_indices = @transform_3, window_bounds = array<i64: 1, 128>}, {pipeline_mode = #tpu.pipeline_mode<synchronous>, transform_indices = @transform_4, window_bounds = array<i64: 1, 128>}, {transform_indices = @transform_5, window_bounds = array<i64: 32, 128>}]} {
    %c0 = arith.constant 0 : index
    %c0_0 = arith.constant 0 : index
    %0 = vector.load %arg1[%c0, %c0_0] : memref<32x256xbf16, #tpu.memory_space<vmem>>, vector<32x256xbf16>
    %c0_1 = arith.constant 0 : index
    %c0_2 = arith.constant 0 : index
    %1 = vector.load %arg2[%c0_1, %c0_2] : memref<256x128xbf16, #tpu.memory_space<vmem>>, vector<256x128xbf16>
    %cst = arith.constant dense<0.000000e+00> : vector<32x128xf32>
    %2 = tpu.matmul %0, %1, %cst {dimension_numbers = #tpu.dot_dimension_numbers<[1], [0], [0], [1], [0, 0, 1, 1], [], []>} : vector<32x256xbf16>, vector<256x128xbf16>, vector<32x128xf32> -> vector<32x128xf32>
    %c0_3 = arith.constant 0 : index
    %c0_4 = arith.constant 0 : index
    %3 = vector.load %arg3[%c0_3, %c0_4] : memref<1x128xf32, #tpu.memory_space<vmem>>, vector<1x128xf32>
    %4 = vector.broadcast %3 : vector<1x128xf32> to vector<32x128xf32>
    %5 = arith.addf %2, %4 : vector<32x128xf32>
    %cst_5 = arith.constant dense<0.000000e+00> : vector<32xf32>
    %6 = vector.multi_reduction <add>, %5, %cst_5 [1] : vector<32x128xf32> to vector<32xf32>
    %7 = vector.shape_cast %6 : vector<32xf32> to vector<32x1xf32>
    %cst_6 = arith.constant 3.125000e-02 : f32
    %8 = vector.broadcast %cst_6 : f32 to vector<32x1xf32>
    %9 = arith.mulf %7, %8 : vector<32x1xf32>
    %10 = arith.mulf %5, %5 : vector<32x128xf32>
    %cst_7 = arith.constant dense<0.000000e+00> : vector<32xf32>
    %11 = vector.multi_reduction <add>, %10, %cst_7 [1] : vector<32x128xf32> to vector<32xf32>
    %12 = vector.shape_cast %11 : vector<32xf32> to vector<32x1xf32>
    %cst_8 = arith.constant 3.125000e-02 : f32
    %13 = vector.broadcast %cst_8 : f32 to vector<32x1xf32>
    %14 = arith.mulf %12, %13 : vector<32x1xf32>
    %15 = arith.mulf %9, %9 : vector<32x1xf32>
    %16 = arith.subf %14, %15 : vector<32x1xf32>
    %cst_9 = arith.constant 0.000000e+00 : f32
    %17 = vector.broadcast %cst_9 : f32 to vector<32x1xf32>
    %18 = arith.maximumf %16, %17 : vector<32x1xf32>
    %19 = vector.broadcast %9 : vector<32x1xf32> to vector<32x128xf32>
    %20 = arith.subf %5, %19 : vector<32x128xf32>
    %cst_10 = arith.constant 9.99999974E-6 : f32
    %21 = vector.broadcast %cst_10 : f32 to vector<32x1xf32>
    %22 = arith.addf %18, %21 : vector<32x1xf32>
    %23 = math.rsqrt %22 : vector<32x1xf32>
    %24 = vector.broadcast %23 : vector<32x1xf32> to vector<32x128xf32>
    %25 = arith.mulf %20, %24 : vector<32x128xf32>
    %c0_11 = arith.constant 0 : index
    %c0_12 = arith.constant 0 : index
    %26 = vector.load %arg4[%c0_11, %c0_12] : memref<1x128xf32, #tpu.memory_space<vmem>>, vector<1x128xf32>
    %27 = vector.broadcast %26 : vector<1x128xf32> to vector<32x128xf32>
    %28 = arith.mulf %25, %27 : vector<32x128xf32>
    %c0_13 = arith.constant 0 : index
    %c0_14 = arith.constant 0 : index
    %29 = vector.load %arg5[%c0_13, %c0_14] : memref<1x128xf32, #tpu.memory_space<vmem>>, vector<1x128xf32>
    %30 = vector.broadcast %29 : vector<1x128xf32> to vector<32x128xf32>
    %31 = arith.addf %28, %30 : vector<32x128xf32>
    %c0_15 = arith.constant 0 : index
    %c0_16 = arith.constant 0 : index
    %32 = vector.load %arg6[%c0_15, %c0_16] : memref<32x128xf32, #tpu.memory_space<vmem>>, vector<32x128xf32>
    tpu.vector_store %arg6[%c0_15, %c0_16], %31 {strides = array<i32>} : memref<32x128xf32, #tpu.memory_space<vmem>>, vector<32x128xf32>,
    return
  }
  func.func @transform_0(%arg0: i32) -> (i32, i32) {
    %c0_i32 = arith.constant 0 : i32
    %c0_i32_0 = arith.constant 0 : i32
    return %arg0, %c0_i32 : i32, i32
  }
  func.func @transform_1(%arg0: i32) -> (i32, i32) {
    %c0_i32 = arith.constant 0 : i32
    %c0_i32_0 = arith.constant 0 : i32
    %c0_i32_1 = arith.constant 0 : i32
    return %c0_i32, %c0_i32_0 : i32, i32
  }
  func.func @transform_2(%arg0: i32) -> (i32, i32) {
    %c0_i32 = arith.constant 0 : i32
    %c0_i32_0 = arith.constant 0 : i32
    %c0_i32_1 = arith.constant 0 : i32
    return %c0_i32, %c0_i32_0 : i32, i32
  }
  func.func @transform_3(%arg0: i32) -> (i32, i32) {
    %c0_i32 = arith.constant 0 : i32
    %c0_i32_0 = arith.constant 0 : i32
    %c0_i32_1 = arith.constant 0 : i32
    return %c0_i32, %c0_i32_0 : i32, i32
  }
  func.func @transform_4(%arg0: i32) -> (i32, i32) {
    %c0_i32 = arith.constant 0 : i32
    %c0_i32_0 = arith.constant 0 : i32
    %c0_i32_1 = arith.constant 0 : i32
    return %c0_i32, %c0_i32_0 : i32, i32
  }
  func.func @transform_5(%arg0: i32) -> (i32, i32) {
    %c0_i32 = arith.constant 0 : i32
    %c0_i32_0 = arith.constant 0 : i32
    return %arg0, %c0_i32 : i32, i32
  }
}

</mosaic_0001>

<llo_original>
// kernel: overlap_patch_embed.1
$region0: #{overlap_patch_embed.1}
  #allocation0 [shape = 'u32[]', space=smem, size = 0x4, offset = 0x4, fixed_abs, tag = 'smem constant byte address 0x4 - core index']
  #allocation1 [shape = 'u32[144,128]{1,0:T(1,128)}', space=vmem, size = 0x12000, scoped, tag = 'internal scratch']
  %s0 = inlined_call_operand.vmem [shape: bf16[32,256], index: 0, kind: input, shape index: {}]
  %s1 = inlined_call_operand.vmem [shape: bf16[256,128], index: 1, kind: input, shape index: {}]
  %s2 = inlined_call_operand.vmem [shape: f32[1,128], index: 2, kind: input, shape index: {}]
  %s3 = inlined_call_operand.vmem [shape: f32[1,128], index: 3, kind: input, shape index: {}]
  %s4 = inlined_call_operand.vmem [shape: f32[1,128], index: 4, kind: input, shape index: {}]
  %s5 = inlined_call_operand.hbm [shape: f32[32,128], index: 5, kind: output, shape index: {}]
  %s6 = sld [smem:[#allocation0]]
  $region30: #{overlap_patch_embed.1} parent=0
    _
  %s8 = ssub.s32 1, %s6
  %s9 = scalar_select 0, %s8, %s6
  $region1: #{overlap_patch_embed.1} parent=0
    #allocation2 [shape = 'u8[16384]{0}', space=vmem, size = 0x4000, scoped, tag = 'output window, operand 0, single buffered']
    #allocation3 [shape = 's32[1]{0}', space=sflag, size = 0x4, scoped, tag = 'scoped memory for overlap_patch_embed.1']
    %10 = vsyncpa [#allocation3], 0
    // Predicated region
    $region2: #{overlap_patch_embed.1} parent=1 // pred_check
      _
    $region3: #{overlap_patch_embed.1} parent=1 // pred_check_branch
      %12 = sbr.rel (0) target = $region5
    $region4: #{overlap_patch_embed.1} parent=1 // pred_region
      _
    $region5: #{overlap_patch_embed.1} parent=1 // pred_fallthru
      _
    // Predicated region
    $region6: #{overlap_patch_embed.1} parent=1 // pred_check
      _
    $region7: #{overlap_patch_embed.1} parent=1 // pred_check_branch
      %14 = sbr.rel (0) target = $region9
    $region8: #{overlap_patch_embed.1} parent=1 // pred_region
      _
    $region9: #{overlap_patch_embed.1} parent=1 // pred_fallthru
      _
    // Predicated region
    $region10: #{overlap_patch_embed.1} parent=1 // pred_check
      _
    $region11: #{overlap_patch_embed.1} parent=1 // pred_check_branch
      %16 = sbr.rel (0) target = $region13
    $region12: #{overlap_patch_embed.1} parent=1 // pred_region
      _
    $region13: #{overlap_patch_embed.1} parent=1 // pred_fallthru
      _
    // Predicated region
    $region14: #{overlap_patch_embed.1} parent=1 // pred_check
      _
    $region15: #{overlap_patch_embed.1} parent=1 // pred_check_branch
      %18 = sbr.rel (0) target = $region17
    $region16: #{overlap_patch_embed.1} parent=1 // pred_region
      _
    $region17: #{overlap_patch_embed.1} parent=1 // pred_fallthru
      _
    // Predicated region
    $region18: #{overlap_patch_embed.1} parent=1 // pred_check
      _
    $region19: #{overlap_patch_embed.1} parent=1 // pred_check_branch
      %20 = sbr.rel (0) target = $region21
    $region20: #{overlap_patch_embed.1} parent=1 // pred_region
      _
    $region21: #{overlap_patch_embed.1} parent=1 // pred_fallthru
      _
    %v22 = vld [vmem:[%s0] sm:$0xff]
    %v23 = vld [vmem:[%s0 + $0x8] sm:$0xff]
    %v24 = vld [vmem:[%s0 + $0x10] sm:$0xff]
    %v25 = vld [vmem:[%s0 + $0x18] sm:$0xff]
    %v26 = vld [vmem:[%s1] sm:$0xf]
    %v27 = vld [vmem:[%s1 + $0x4] sm:$0xf]
    %v28 = vld [vmem:[%s1 + $0x8] sm:$0xf]
    %v29 = vld [vmem:[%s1 + $0xc] sm:$0xf]
    %v30 = vld [vmem:[%s1 + $0x10] sm:$0xf]
    %v31 = vld [vmem:[%s1 + $0x14] sm:$0xf]
    %v32 = vld [vmem:[%s1 + $0x18] sm:$0xf]
    %v33 = vld [vmem:[%s1 + $0x1c] sm:$0xf]
    %v34 = vld [vmem:[%s1 + $0x20] sm:$0xf]
    %v35 = vld [vmem:[%s1 + $0x24] sm:$0xf]
    %v36 = vld [vmem:[%s1 + $0x28] sm:$0xf]
    %v37 = vld [vmem:[%s1 + $0x2c] sm:$0xf]
    %v38 = vld [vmem:[%s1 + $0x30] sm:$0xf]
    %v39 = vld [vmem:[%s1 + $0x34] sm:$0xf]
    %v40 = vld [vmem:[%s1 + $0x38] sm:$0xf]
    %v41 = vld [vmem:[%s1 + $0x3c] sm:$0xf]
    %v42 = vld [vmem:[%s1 + $0x40] sm:$0xf]
    %v43 = vld [vmem:[%s1 + $0x44] sm:$0xf]
    %v44 = vld [vmem:[%s1 + $0x48] sm:$0xf]
    %v45 = vld [vmem:[%s1 + $0x4c] sm:$0xf]
    %v46 = vld [vmem:[%s1 + $0x50] sm:$0xf]
    %v47 = vld [vmem:[%s1 + $0x54] sm:$0xf]
    %v48 = vld [vmem:[%s1 + $0x58] sm:$0xf]
    %v49 = vld [vmem:[%s1 + $0x5c] sm:$0xf]
    %v50 = vld [vmem:[%s1 + $0x60] sm:$0xf]
    %v51 = vld [vmem:[%s1 + $0x64] sm:$0xf]
    %v52 = vld [vmem:[%s1 + $0x68] sm:$0xf]
    %v53 = vld [vmem:[%s1 + $0x6c] sm:$0xf]
    %v54 = vld [vmem:[%s1 + $0x70] sm:$0xf]
    %v55 = vld [vmem:[%s1 + $0x74] sm:$0xf]
    %v56 = vld [vmem:[%s1 + $0x78] sm:$0xf]
    %v57 = vld [vmem:[%s1 + $0x7c] sm:$0xf]
    %v58 = vld [vmem:[%s2] sm:$0x1]
    %v60 = vlaneseq
    %v61 = vshrl.u32 %v60, 7
    %v62 = vsub.s32 0, %v61
    %v63 = vrot.slane %v58, %v62
    %v69 = vunpack.c.l.b16 %v22
    %v70 = vunpack.c.h.b16 %v22
    %v71 = vunpack.c.l.b16 %v23
    %v72 = vunpack.c.h.b16 %v23
    %v73 = vunpack.c.l.b16 %v24
    %v74 = vunpack.c.h.b16 %v24
    %v75 = vunpack.c.l.b16 %v25
    %v76 = vunpack.c.h.b16 %v25
    %v77 = vpack.c.b16 %v71, %v69
    %v78 = vpack.c.b16 %v72, %v70
    %v79 = vpack.c.b16 %v75, %v73
    %v80 = vpack.c.b16 %v76, %v74
    %v117 = vunpack.c.l.b16 %v26
    %v118 = vunpack.c.l.b16 %v27
    %v119 = vunpack.c.l.b16 %v28
    %v120 = vunpack.c.l.b16 %v29
    %v121 = vunpack.c.l.b16 %v30
    %v122 = vunpack.c.l.b16 %v31
    %v123 = vunpack.c.l.b16 %v32
    %v124 = vunpack.c.l.b16 %v33
    %v125 = vunpack.c.l.b16 %v34
    %v126 = vunpack.c.l.b16 %v35
    %v127 = vunpack.c.l.b16 %v36
    %v128 = vunpack.c.l.b16 %v37
    %v129 = vunpack.c.l.b16 %v38
    %v130 = vunpack.c.l.b16 %v39
    %v131 = vunpack.c.l.b16 %v40
    %v132 = vunpack.c.l.b16 %v41
    %v133 = vunpack.c.l.b16 %v42
    %v134 = vunpack.c.l.b16 %v43
    %v135 = vunpack.c.l.b16 %v44
    %v136 = vunpack.c.l.b16 %v45
    %v137 = vunpack.c.l.b16 %v46
    %v138 = vunpack.c.l.b16 %v47
    %v139 = vunpack.c.l.b16 %v48
    %v140 = vunpack.c.l.b16 %v49
    %v141 = vunpack.c.l.b16 %v50
    %v142 = vunpack.c.l.b16 %v51
    %v143 = vunpack.c.l.b16 %v52
    %v144 = vunpack.c.l.b16 %v53
    %v145 = vunpack.c.l.b16 %v54
    %v146 = vunpack.c.l.b16 %v55
    %v147 = vunpack.c.l.b16 %v56
    %v148 = vunpack.c.l.b16 %v57
    %v149 = vpack.c.b16 %v118, %v117
    %v150 = vpack.c.b16 %v120, %v119
    %v151 = vpack.c.b16 %v122, %v121
    %v152 = vpack.c.b16 %v124, %v123
    %v153 = vpack.c.b16 %v126, %v125
    %v154 = vpack.c.b16 %v128, %v127
    %v155 = vpack.c.b16 %v130, %v129
    %v156 = vpack.c.b16 %v132, %v131
    %v157 = vpack.c.b16 %v134, %v133
    %v158 = vpack.c.b16 %v136, %v135
    %v159 = vpack.c.b16 %v138, %v137
    %v160 = vpack.c.b16 %v140, %v139
    %v161 = vpack.c.b16 %v142, %v141
    %v162 = vpack.c.b16 %v144, %v143
    %v163 = vpack.c.b16 %v146, %v145
    %v164 = vpack.c.b16 %v148, %v147
    %181 = vmatprep.subr.bf16.mxu0 0
    %182 = vmatpush1.bf16.msra.mxu0 %v149
    %183 = vmatprep.subr.bf16.mxu0 0
    %184 = vmatpush1.bf16.msra.mxu0 %v150
    %185 = vmatprep.subr.bf16.mxu0 0
    %186 = vmatpush1.bf16.msra.mxu0 %v151
    %187 = vmatprep.subr.bf16.mxu0 0
    %188 = vmatpush1.bf16.msra.mxu0 %v152
    %189 = vmatprep.subr.bf16.mxu0 0
    %190 = vmatpush1.bf16.msra.mxu0 %v153
    %191 = vmatprep.subr.bf16.mxu0 0
    %192 = vmatpush1.bf16.msra.mxu0 %v154
    %193 = vmatprep.subr.bf16.mxu0 0
    %194 = vmatpush1.bf16.msra.mxu0 %v155
    %195 = vmatprep.subr.bf16.mxu0 0
    %196 = vmatpush1.bf16.msra.mxu0 %v156
    %197 = vmatprep.subr.bf16.mxu0 0
    %198 = vmatpush1.bf16.msra.mxu0 %v157
    %199 = vmatprep.subr.bf16.mxu0 0
    %200 = vmatpush1.bf16.msra.mxu0 %v158
    %201 = vmatprep.subr.bf16.mxu0 0
    %202 = vmatpush1.bf16.msra.mxu0 %v159
    %203 = vmatprep.subr.bf16.mxu0 0
    %204 = vmatpush1.bf16.msra.mxu0 %v160
    %205 = vmatprep.subr.bf16.mxu0 0
    %206 = vmatpush1.bf16.msra.mxu0 %v161
    %207 = vmatprep.subr.bf16.mxu0 0
    %208 = vmatpush1.bf16.msra.mxu0 %v162
    %209 = vmatprep.subr.bf16.mxu0 0
    %210 = vmatpush1.bf16.msra.mxu0 %v163
    %211 = vmatprep.subr.bf16.mxu0 0
    %212 = vmatpush1.bf16.msra.mxu0 %v164
    %213 = vmatprep.mubr.bf16.mxu0 %v78
    %214 = vmatmul.mubr.bf16.gmra.mrb[0].mxu0 %v77
    %v215 = vpop.f32.mrb[0].mxu0
    %v216 = vadd.f32 %v63, %v215
    %v217 = vpop.f32.mrb[0].mxu0
    %v218 = vpop.f32.mrb[0].mxu0
    %v219 = vadd.f32 %v63, %v218
    %v220 = vpop.f32.mrb[0].mxu0
    %221 = vmatprep.mubr.bf16.mxu0 %v80
    %222 = vmatmul.mubr.bf16.gmra.mrb[0].mxu0 %v79
    %v223 = vpop.f32.mrb[0].mxu0
    %v224 = vadd.f32 %v63, %v223
    %v225 = vpop.f32.mrb[0].mxu0
    %v226 = vpop.f32.mrb[0].mxu0
    %v227 = vadd.f32 %v63, %v226
    %v228 = vpop.f32.mrb[0].mxu0
    %229 = vdwg.mxu0
    %230 = vadd.xlane.f32.xlu0 %v216
    %v231 = vpop.xlane.xlu0 %230
    %232 = vadd.xlane.f32.xlu0 %v219
    %v233 = vpop.xlane.xlu0 %232
    %234 = vadd.xlane.f32.xlu0 %v224
    %v235 = vpop.xlane.xlu0 %234
    %236 = vadd.xlane.f32.xlu0 %v227
    %v237 = vpop.xlane.xlu0 %236
    %v238 = vmul.f32 %v231, 0.03125
    %v239 = vmul.f32 %v233, 0.03125
    %v240 = vmul.f32 %v235, 0.03125
    %v241 = vmul.f32 %v237, 0.03125
    %v242 = vmul.f32 %v216, %v216
    %v243 = vmul.f32 %v219, %v219
    %v244 = vmul.f32 %v224, %v224
    %v245 = vmul.f32 %v227, %v227
    %246 = vadd.xlane.f32.xlu0 %v242
    %v247 = vpop.xlane.xlu0 %246
    %248 = vadd.xlane.f32.xlu0 %v243
    %v249 = vpop.xlane.xlu0 %248
    %250 = vadd.xlane.f32.xlu0 %v244
    %v251 = vpop.xlane.xlu0 %250
    %252 = vadd.xlane.f32.xlu0 %v245
    %v253 = vpop.xlane.xlu0 %252
    %v254 = vmul.f32 %v247, 0.03125
    %v255 = vmul.f32 %v249, 0.03125
    %v256 = vmul.f32 %v251, 0.03125
    %v257 = vmul.f32 %v253, 0.03125
    %v258 = vmul.f32 %v238, %v238
    %v259 = vmul.f32 %v239, %v239
    %v260 = vmul.f32 %v240, %v240
    %v261 = vmul.f32 %v241, %v241
    %v262 = vsub.f32 %v254, %v258
    %v263 = vsub.f32 %v255, %v259
    %v264 = vsub.f32 %v256, %v260
    %v265 = vsub.f32 %v257, %v261
    %v266 = vmax.f32 %v262, 0.0
    %v267 = vmax.f32 %v263, 0.0
    %v268 = vmax.f32 %v264, 0.0
    %v269 = vmax.f32 %v265, 0.0
    %v270 = vsub.f32 %v216, %v238
    %v271 = vsub.f32 %v219, %v239
    %v272 = vsub.f32 %v224, %v240
    %v273 = vsub.f32 %v227, %v241
    %v274 = vadd.f32 %v266, 1e-05
    %v275 = vadd.f32 %v267, 1e-05
    %v276 = vadd.f32 %v268, 1e-05
    %v277 = vadd.f32 %v269, 1e-05
    %v278 = vrsqrt.pop %v274
    %v279 = vrsqrt.pop %v275
    %v280 = vrsqrt.pop %v276
    %v281 = vrsqrt.pop %v277
    %v282 = vmul.f32 %v270, %v278
    %v283 = vmul.f32 %v271, %v279
    %v284 = vmul.f32 %v272, %v280
    %v285 = vmul.f32 %v273, %v281
    %v286 = vld [vmem:[%s3] sm:$0x1]
    %v288 = vlaneseq
    %v289 = vshrl.u32 %v288, 7
    %v290 = vsub.s32 0, %v289
    %v291 = vrot.slane %v286, %v290
    %v293 = vmul.f32 %v282, %v291
    %v294 = vmul.f32 %v283, %v291
    %v295 = vmul.f32 %v284, %v291
    %v296 = vmul.f32 %v285, %v291
    %v297 = vld [vmem:[%s4] sm:$0x1]
    %v299 = vlaneseq
    %v300 = vshrl.u32 %v299, 7
    %v301 = vsub.s32 0, %v300
    %v302 = vrot.slane %v297, %v301
    %v304 = vadd.f32 %v293, %v302
    %v305 = vadd.f32 %v294, %v302
    %v306 = vadd.f32 %v295, %v302
    %v307 = vadd.f32 %v296, %v302
    %308 = vst [vmem:[#allocation2] sm:$0xff] %v304
    %309 = vst [vmem:[#allocation2 + $0x8] sm:$0xff] %v305
    %310 = vst [vmem:[#allocation2 + $0x10] sm:$0xff] %v306
    %311 = vst [vmem:[#allocation2 + $0x18] sm:$0xff] %v307
    // Predicated region
    $region22: #{overlap_patch_embed.1} parent=1 // pred_check
      _
    $region23: #{overlap_patch_embed.1} parent=1 // pred_check_branch
      %313 = sbr.rel (0) target = $region25
    $region24: #{overlap_patch_embed.1} parent=1 // pred_region
      %s315 = ssub.s32 512, 512
      %316 = vsyncadd [#allocation3], %s315
      %s317 = sshll.u32 [#allocation2], 4
      %s318 = int_to_ptr.vmem [resolvable:$true] %s317
      %323 = dma.vmem_to_hbm [thread:$0]  %s318, 512, %s5, [#allocation3], 128, 128, 8
    $region25: #{overlap_patch_embed.1} parent=1 // pred_fallthru
      _
    // Predicated region
    $region26: #{overlap_patch_embed.1} parent=1 // pred_check
      _
    $region27: #{overlap_patch_embed.1} parent=1 // pred_check_branch
      %325 = sbr.rel (0) target = $region29
    $region28: #{overlap_patch_embed.1} parent=1 // pred_region
      %326 = dma.done [#allocation3], 512
    $region29: #{overlap_patch_embed.1} parent=1 // pred_fallthru
      _
    %327 = vsyncpa [#allocation3], 1

</llo_original>
